<compile_context>
chip_gen: v6e
topology: v6e:2x2x1
jax: 0.10.0
libtpu: 0.0.40
codegen_flags: <defaults>
</compile_context>

<pallas_src>
import functools

import jax
import jax.numpy as jnp
from jax.experimental import pallas as pl
from jax.experimental.pallas import tpu as pltpu


def _round_up(x, m):
    return ((x + m - 1) // m) * m


def _cdiv(a, b):
    return (a + b - 1) // b


# ----------------------------------------------------------------------------
# Pallas kernels
# ----------------------------------------------------------------------------
def _mm_affine_single_kernel(x_ref, w_ref, *rest, apply_relu, has_scale):
    """Single-K-step MXU GEMM with fused per-channel affine (+ReLU).

    The K block spans the whole (zero-padded) contraction, so no accumulator
    scratch or K grid axis is needed.
    """
    if has_scale:
        s_ref, b_ref, o_ref = rest
    else:
        b_ref, o_ref = rest
    acc = jnp.dot(x_ref[...], w_ref[...], preferred_element_type=jnp.float32)
    if has_scale:
        acc = acc * s_ref[...]
    acc = acc + b_ref[...]
    if apply_relu:
        acc = jnp.maximum(acc, 0.0)
    o_ref[...] = acc.astype(o_ref.dtype)


def _mm_affine_multi_kernel(x_ref, w_ref, *rest, apply_relu, has_scale):
    """Multi-K-step GEMM (K > tk) with an f32 VMEM accumulator and fused
    affine/ReLU epilogue on the last K step.  Not exercised in this network
    (all K <= 2048) but kept for generality."""
    if has_scale:
        s_ref, b_ref, o_ref, acc_ref = rest
    else:
        b_ref, o_ref, acc_ref = rest
    k = pl.program_id(2)

    @pl.when(k == 0)
    def _():
        acc_ref[...] = jnp.zeros_like(acc_ref)

    acc_ref[...] += jnp.dot(x_ref[...], w_ref[...],
                            preferred_element_type=jnp.float32)

    @pl.when(k == pl.num_programs(2) - 1)
    def _():
        acc = acc_ref[...]
        if has_scale:
            acc = acc * s_ref[...]
        acc = acc + b_ref[...]
        if apply_relu:
            acc = jnp.maximum(acc, 0.0)
        o_ref[...] = acc.astype(o_ref.dtype)


def matmul_affine(x2d, w2d, scale, bias, *, apply_relu,
                  out_dtype=jnp.float32, tm=256, tn=256, tk=2048):
    """y = maybe_relu((x2d @ w2d) [* scale] + bias).

    bf16 MXU inputs, f32 accumulation/epilogue, output in `out_dtype`.
    Only K is zero-padded; M/N edges are handled with partial blocks
    (garbage rows/cols never reach valid output locations).
    """
    M, K = x2d.shape
    K2, N = w2d.shape
    assert K == K2

    xb = x2d.astype(jnp.bfloat16)
    wb = w2d.astype(jnp.bfloat16)

    if K <= tk:
        Kp = _round_up(K, 16)          # bf16 sublane packing; cheap, XLA fuses
        n_k = 1
        tk = Kp
    else:
        Kp = _round_up(K, tk)
        n_k = Kp // tk
    if Kp != K:
        xb = jnp.pad(xb, ((0, 0), (0, Kp - K)))
        wb = jnp.pad(wb, ((0, Kp - K), (0, 0)))

    tm = min(tm, _round_up(M, 8))
    tn = min(tn, _round_up(N, 128))
    # v7x has two TensorCores: if the parallel grid would collapse to a single
    # block, split the N axis so both cores get work (no effect on v5e/v6e).
    if _cdiv(M, tm) == 1 and _cdiv(N, tn) == 1 and N > 128:
        tn = _round_up(_cdiv(N, 2), 128)

    has_scale = scale is not None
    ops = [xb, wb]
    specs_2d = [pl.BlockSpec((tm, tk), lambda i, j: (i, 0)),
                pl.BlockSpec((tk, tn), lambda i, j: (0, j))]
    specs_3d = [pl.BlockSpec((tm, tk), lambda i, j, k: (i, k)),
                pl.BlockSpec((tk, tn), lambda i, j, k: (k, j))]
    if has_scale:
        ops.append(scale.astype(jnp.float32).reshape(1, N))
        specs_2d.append(pl.BlockSpec((1, tn), lambda i, j: (0, j)))
        specs_3d.append(pl.BlockSpec((1, tn), lambda i, j, k: (0, j)))
    ops.append(bias.astype(jnp.float32).reshape(1, N))
    specs_2d.append(pl.BlockSpec((1, tn), lambda i, j: (0, j)))
    specs_3d.append(pl.BlockSpec((1, tn), lambda i, j, k: (0, j)))

    if n_k == 1:
        kernel = functools.partial(_mm_affine_single_kernel,
                                   apply_relu=apply_relu, has_scale=has_scale)
        grid_spec = pltpu.PrefetchScalarGridSpec(
            num_scalar_prefetch=0,
            grid=(_cdiv(M, tm), _cdiv(N, tn)),
            in_specs=specs_2d,
            out_specs=pl.BlockSpec((tm, tn), lambda i, j: (i, j)),
        )
        dims = ("parallel", "parallel")
    else:
        kernel = functools.partial(_mm_affine_multi_kernel,
                                   apply_relu=apply_relu, has_scale=has_scale)
        grid_spec = pltpu.PrefetchScalarGridSpec(
            num_scalar_prefetch=0,
            grid=(_cdiv(M, tm), _cdiv(N, tn), n_k),
            in_specs=specs_3d,
            out_specs=pl.BlockSpec((tm, tn), lambda i, j, k: (i, j)),
            scratch_shapes=[pltpu.VMEM((tm, tn), jnp.float32)],
        )
        dims = ("parallel", "parallel", "arbitrary")

    return pl.pallas_call(
        kernel,
        out_shape=jax.ShapeDtypeStruct((M, N), out_dtype),
        grid_spec=grid_spec,
        compiler_params=pltpu.CompilerParams(
            dimension_semantics=dims,
            vmem_limit_bytes=32 << 20,
        ),
    )(*ops)


def _avgpool_kernel(x_ref, o_ref, *, inv_area):
    # x: (N, C, H*W) resident block -> mean over the flattened spatial axis.
    o_ref[...] = (jnp.sum(x_ref[...], axis=-1) * inv_area).astype(o_ref.dtype)


def avgpool2d_full_nchw(x_nchw, k):
    """AvgPool2d(k) on an exactly k x k feature map, NCHW-native (no layout
    transposes), single resident grid step (whole block is only ~400 KiB)."""
    n, c, h, w = x_nchw.shape
    assert h == k and w == k, "AvgPool2d(7) is applied to a 7x7 feature map"
    x = x_nchw.reshape(n, c, h * w).astype(jnp.float32)
    tc = _round_up(c, 8)
    out = pl.pallas_call(
        functools.partial(_avgpool_kernel, inv_area=1.0 / float(k * k)),
        out_shape=jax.ShapeDtypeStruct((n, tc), jnp.float32),
        grid_spec=pltpu.PrefetchScalarGridSpec(
            num_scalar_prefetch=0,
            grid=(1,),
            in_specs=[pl.BlockSpec((n, tc, h * w), lambda i: (0, 0, 0))],
            out_specs=pl.BlockSpec((n, tc), lambda i: (0, 0)),
        ),
    )(x)
    return out[:, :c].reshape(n, c, 1, 1)


# ----------------------------------------------------------------------------
# Conv wrapper (im2col glue + Pallas tiled matmul hot path)
# ----------------------------------------------------------------------------
def conv_bn_relu(x_nhwc, w_hwio, scale, bias, stride, padding):
    """Conv2d(bias=False) + folded BatchNorm (eval) + ReLU, bf16 output."""
    n, h, w, cin = x_nhwc.shape
    kh, kw, cin2, cout = w_hwio.shape
    assert cin == cin2
    hout = (h + 2 * padding - kh) // stride + 1
    wout = (w + 2 * padding - kw) // stride + 1
    xb = x_nhwc.astype(jnp.bfloat16)         # bf16 patches: half the HBM traffic
    if kh == 1 and kw == 1 and stride == 1 and padding == 0:
        # 1x1 conv: pure reshape, no patch materialization.
        x2d = xb.reshape(n * hout * wout, cin)
    else:
        # TODO(synk): strided im2col still materializes kh*kw shifted taps in
        # HBM (XLA fuses pad+slices+concat into one patch-tensor write); a
        # fused direct-conv kernel would remove this round trip entirely.
        xp = jnp.pad(xb, ((0, 0), (padding, padding), (padding, padding), (0, 0)))
        taps = [xp[:, i:i + stride * hout:stride, j:j + stride * wout:stride, :]
                for i in range(kh) for j in range(kw)]
        x2d = jnp.concatenate(taps, axis=-1).reshape(n * hout * wout, kh * kw * cin)
    w2d = w_hwio.reshape(kh * kw * cin, cout)
    # bf16 output: these layers are memory-bound and the next layer re-casts.
    y2d = matmul_affine(x2d, w2d, scale, bias, apply_relu=True,
                        out_dtype=jnp.bfloat16)
    return y2d.reshape(n, hout, wout, cout)


def _fold_bn(gamma, beta, mean, var, eps=1e-5):
    scale = gamma / jnp.sqrt(var + eps)
    bias = beta - mean * scale
    return scale, bias


# ----------------------------------------------------------------------------
# Module
# ----------------------------------------------------------------------------
class SPOSSupernetFLOPs:
    """Pallas port of SPOS_Supernet_FLOPs (forward dispatch on `idx`)."""

    def __init__(self, in_channel_list, num_layer_list, num_classes=1000,
                 num_block_type=4, *, key):
        img_channels = 3
        out_channels = 1024
        self.in_channel_list = in_channel_list
        self.num_layer_list = num_layer_list
        self.num_block_type = num_block_type
        self.img_size = [112, 56, 28, 14, 7]
        self.out_channels = out_channels

        ks = jax.random.split(key, 12)
        c0 = in_channel_list[0]
        c_last = in_channel_list[-1]

        # conv1: ConvBlock(3 -> c0, k=3, s=2, p=1)
        self.w1 = 0.1 * jax.random.normal(ks[0], (3, 3, img_channels, c0), jnp.float32)
        g1 = 1.0 + 0.1 * jax.random.normal(ks[1], (c0,), jnp.float32)
        b1 = 0.1 * jax.random.normal(ks[2], (c0,), jnp.float32)
        m1 = 0.05 * jax.random.normal(ks[3], (c0,), jnp.float32)
        v1 = 1.0 + 0.1 * jax.random.uniform(ks[4], (c0,), jnp.float32)
        self.s1, self.bias1 = _fold_bn(g1, b1, m1, v1)

        # conv2: ConvBlock(c_last -> 1024, k=1, s=1, p=0)
        self.w2 = 0.05 * jax.random.normal(ks[5], (1, 1, c_last, out_channels), jnp.float32)
        g2 = 1.0 + 0.1 * jax.random.normal(ks[6], (out_channels,), jnp.float32)
        b2 = 0.1 * jax.random.normal(ks[7], (out_channels,), jnp.float32)
        m2 = 0.05 * jax.random.normal(ks[8], (out_channels,), jnp.float32)
        v2 = 1.0 + 0.1 * jax.random.uniform(ks[9], (out_channels,), jnp.float32)
        self.s2, self.bias2 = _fold_bn(g2, b2, m2, v2)

        # fc: Linear(1024 -> num_classes) (weights stored already transposed)
        self.fc_w = 0.02 * jax.random.normal(ks[10], (out_channels, num_classes), jnp.float32)
        self.fc_b = 0.01 * jax.random.normal(ks[11], (num_classes,), jnp.float32)

    def __call__(self, x, idx):
        if idx == 0:
            x_nhwc = jnp.transpose(x, (0, 2, 3, 1))                 # NCHW -> NHWC
            y = conv_bn_relu(x_nhwc, self.w1, self.s1, self.bias1, stride=2, padding=1)
            return jnp.transpose(y, (0, 3, 1, 2)).astype(jnp.float32)
        elif idx == 2:
            x_nhwc = jnp.transpose(x, (0, 2, 3, 1))
            y = conv_bn_relu(x_nhwc, self.w2, self.s2, self.bias2, stride=1, padding=0)
            return jnp.transpose(y, (0, 3, 1, 2)).astype(jnp.float32)
        elif idx == 3:
            return avgpool2d_full_nchw(x, 7)
        elif idx == 4:
            return matmul_affine(x, self.fc_w, None, self.fc_b,
                                 apply_relu=False, out_dtype=jnp.float32)
        else:
            layer_idx, block_idx = idx
            raise NotImplementedError(
                f"choice_blocks[{layer_idx}][{block_idx}]: create_supernet_blocks "
                "definition unavailable")


# ----------------------------------------------------------------------------
# Pure-JAX references (loose bf16-tolerance checks)
# ----------------------------------------------------------------------------
def _ref_conv_bn_relu(x_nchw, w_hwio, scale, bias, stride, padding):
    w_oihw = jnp.transpose(w_hwio, (3, 2, 0, 1))
    y = jax.lax.conv_general_dilated(
        x_nchw, w_oihw, window_strides=(stride, stride),
        padding=[(padding, padding), (padding, padding)],
        dimension_numbers=("NCHW", "OIHW", "NCHW"))
    y = y * scale[None, :, None, None] + bias[None, :, None, None]
    return jnp.maximum(y, 0.0)


def _close(a, b, atol=5e-2, rtol=5e-2):
    return bool(jnp.allclose(jnp.asarray(a, jnp.float32),
                             jnp.asarray(b, jnp.float32), atol=atol, rtol=rtol))


# ----------------------------------------------------------------------------
# Demo
# ----------------------------------------------------------------------------
if __name__ == "__main__":
    key = jax.random.PRNGKey(0)
    k_model, k0, k2, k3, k4 = jax.random.split(key, 5)

    in_channel_list = [16, 32]
    num_layer_list = [2, 2]
    num_classes = 32

    model = SPOSSupernetFLOPs(in_channel_list, num_layer_list,
                              num_classes=num_classes, key=k_model)

    # Small deterministic inputs (NCHW, matching the torch module).
    x_conv1 = jax.random.normal(k0, (2, 3, 16, 16), jnp.float32)                  # idx == 0
    x_conv2 = jax.random.normal(k2, (2, in_channel_list[-1], 7, 7), jnp.float32)  # idx == 2
    x_pool = jax.random.normal(k3, (2, 1024, 7, 7), jnp.float32)                  # idx == 3
    x_fc = jax.random.normal(k4, (2, 1024), jnp.float32)                          # idx == 4

    y0 = model(x_conv1, 0)
    y2 = model(x_conv2, 2)
    y3 = model(x_pool, 3)
    y4 = model(x_fc, 4)
    jax.block_until_ready((y0, y2, y3, y4))

    assert y0.shape == (2, in_channel_list[0], 8, 8)
    assert y2.shape == (2, 1024, 7, 7)
    assert y3.shape == (2, 1024, 1, 1)
    assert y4.shape == (2, num_classes)

    # Numerical sanity vs pure-JAX references (bf16 MXU inputs -> loose tol).
    assert _close(y0, _ref_conv_bn_relu(x_conv1, model.w1, model.s1, model.bias1, 2, 1))
    assert _close(y2, _ref_conv_bn_relu(x_conv2, model.w2, model.s2, model.bias2, 1, 0))
    assert _close(y3, jnp.mean(x_pool, axis=(2, 3), keepdims=True), atol=1e-4, rtol=1e-4)
    assert _close(y4, x_fc @ model.fc_w + model.fc_b)

    print("KERNEL_OK")
</pallas_src>

<mosaic_0001>
module attributes {stable_mosaic.version = 11 : i64} {
  func.func @_mm_affine_single_kernel(%arg0: i32, %arg1: i32, %arg2: memref<128x32xbf16, #tpu.memory_space<vmem>>, %arg3: memref<32x128xbf16, #tpu.memory_space<vmem>>, %arg4: memref<1x128xf32, #tpu.memory_space<vmem>>, %arg5: memref<1x128xf32, #tpu.memory_space<vmem>>, %arg6: memref<128x128xbf16, #tpu.memory_space<vmem>>) attributes {dimension_semantics = [#tpu.dimension_semantics<parallel>, #tpu.dimension_semantics<parallel>], iteration_bounds = array<i64: 1, 1>, scalar_prefetch = 0 : i64, scratch_operands = 0 : i64, tpu.core_type = #tpu.core_type<tc>, window_params = [{transform_indices = @transform_0, window_bounds = array<i64: 128, 32>}, {transform_indices = @transform_1, window_bounds = array<i64: 32, 128>}, {transform_indices = @transform_2, window_bounds = array<i64: 1, 128>}, {transform_indices = @transform_3, window_bounds = array<i64: 1, 128>}, {transform_indices = @transform_4, window_bounds = array<i64: 128, 128>}]} {
    %c0 = arith.constant 0 : index
    %c0_0 = arith.constant 0 : index
    %0 = vector.load %arg2[%c0, %c0_0] : memref<128x32xbf16, #tpu.memory_space<vmem>>, vector<128x32xbf16>
    %c0_1 = arith.constant 0 : index
    %c0_2 = arith.constant 0 : index
    %1 = vector.load %arg3[%c0_1, %c0_2] : memref<32x128xbf16, #tpu.memory_space<vmem>>, vector<32x128xbf16>
    %cst = arith.constant dense<0.000000e+00> : vector<128x128xf32>
    %2 = tpu.matmul %0, %1, %cst {dimension_numbers = #tpu.dot_dimension_numbers<[1], [0], [0], [1], [0, 0, 1, 1], [], []>} : vector<128x32xbf16>, vector<32x128xbf16>, vector<128x128xf32> -> vector<128x128xf32>
    %c0_3 = arith.constant 0 : index
    %c0_4 = arith.constant 0 : index
    %3 = vector.load %arg4[%c0_3, %c0_4] : memref<1x128xf32, #tpu.memory_space<vmem>>, vector<1x128xf32>
    %4 = vector.broadcast %3 : vector<1x128xf32> to vector<128x128xf32>
    %5 = arith.mulf %2, %4 : vector<128x128xf32>
    %c0_5 = arith.constant 0 : index
    %c0_6 = arith.constant 0 : index
    %6 = vector.load %arg5[%c0_5, %c0_6] : memref<1x128xf32, #tpu.memory_space<vmem>>, vector<1x128xf32>
    %7 = vector.broadcast %6 : vector<1x128xf32> to vector<128x128xf32>
    %8 = arith.addf %5, %7 : vector<128x128xf32>
    %cst_7 = arith.constant 0.000000e+00 : f32
    %9 = vector.broadcast %cst_7 : f32 to vector<128x128xf32>
    %10 = arith.maximumf %8, %9 : vector<128x128xf32>
    %11 = arith.truncf %10 : vector<128x128xf32> to vector<128x128xbf16>
    %c0_8 = arith.constant 0 : index
    %c0_9 = arith.constant 0 : index
    %12 = vector.load %arg6[%c0_8, %c0_9] : memref<128x128xbf16, #tpu.memory_space<vmem>>, vector<128x128xbf16>
    tpu.vector_store %arg6[%c0_8, %c0_9], %11 {strides = array<i32>} : memref<128x128xbf16, #tpu.memory_space<vmem>>, vector<128x128xbf16>,
    return
  }
  func.func @transform_0(%arg0: i32, %arg1: i32) -> (i32, i32) {
    %c0_i32 = arith.constant 0 : i32
    %c0_i32_0 = arith.constant 0 : i32
    return %arg0, %c0_i32 : i32, i32
  }
  func.func @transform_1(%arg0: i32, %arg1: i32) -> (i32, i32) {
    %c0_i32 = arith.constant 0 : i32
    %c0_i32_0 = arith.constant 0 : i32
    return %c0_i32, %arg1 : i32, i32
  }
  func.func @transform_2(%arg0: i32, %arg1: i32) -> (i32, i32) {
    %c0_i32 = arith.constant 0 : i32
    %c0_i32_0 = arith.constant 0 : i32
    return %c0_i32, %arg1 : i32, i32
  }
  func.func @transform_3(%arg0: i32, %arg1: i32) -> (i32, i32) {
    %c0_i32 = arith.constant 0 : i32
    %c0_i32_0 = arith.constant 0 : i32
    return %c0_i32, %arg1 : i32, i32
  }
  func.func @transform_4(%arg0: i32, %arg1: i32) -> (i32, i32) {
    %c0_i32 = arith.constant 0 : i32
    return %arg0, %arg1 : i32, i32
  }
}

</mosaic_0001>

<llo_original>
// kernel: tpu_custom_call.1
$region0: #{tpu_custom_call.1}
  #allocation0 [shape = 'u32[]', space=smem, size = 0x4, offset = 0x4, fixed_abs, tag = 'smem constant byte address 0x4 - core index']
  #allocation1 [shape = 'u32[144,128]{1,0:T(1,128)}', space=vmem, size = 0x12000, scoped, tag = 'internal scratch']
  %s0 = inlined_call_operand.vmem [shape: bf16[128,32], index: 0, kind: input, shape index: {}]
  %s1 = inlined_call_operand.vmem [shape: bf16[32,16], index: 1, kind: input, shape index: {}]
  %s2 = inlined_call_operand.vmem [shape: f32[1,16], index: 2, kind: input, shape index: {}]
  %s3 = inlined_call_operand.vmem [shape: f32[1,16], index: 3, kind: input, shape index: {}]
  %s4 = inlined_call_operand.vmem [shape: bf16[128,16], index: 4, kind: output, shape index: {}]
  %s5 = sld [smem:[#allocation0]]
  $region26: #{tpu_custom_call.1} parent=0
    _
  %s7 = ssub.s32 1, %s5
  %s8 = scalar_select 0, %s7, %s5
  // Predicated region
  $region2: #{tpu_custom_call.1} parent=0 // pred_check
    _
  $region3: #{tpu_custom_call.1} parent=0 // pred_check_branch
    %10 = sbr.rel (0) target = $region5
  $region4: #{tpu_custom_call.1} parent=0 // pred_region
    _
  $region5: #{tpu_custom_call.1} parent=0 // pred_fallthru
    _
  // Predicated region
  $region6: #{tpu_custom_call.1} parent=0 // pred_check
    _
  $region7: #{tpu_custom_call.1} parent=0 // pred_check_branch
    %12 = sbr.rel (0) target = $region9
  $region8: #{tpu_custom_call.1} parent=0 // pred_region
    _
  $region9: #{tpu_custom_call.1} parent=0 // pred_fallthru
    _
  // Predicated region
  $region10: #{tpu_custom_call.1} parent=0 // pred_check
    _
  $region11: #{tpu_custom_call.1} parent=0 // pred_check_branch
    %14 = sbr.rel (0) target = $region13
  $region12: #{tpu_custom_call.1} parent=0 // pred_region
    _
  $region13: #{tpu_custom_call.1} parent=0 // pred_fallthru
    _
  // Predicated region
  $region14: #{tpu_custom_call.1} parent=0 // pred_check
    _
  $region15: #{tpu_custom_call.1} parent=0 // pred_check_branch
    %16 = sbr.rel (0) target = $region17
  $region16: #{tpu_custom_call.1} parent=0 // pred_region
    _
  $region17: #{tpu_custom_call.1} parent=0 // pred_fallthru
    _
  %v18 = vld [vmem:[%s0] sm:$0xf]
  %v19 = vld [vmem:[%s0 + $0x4] sm:$0xf]
  %v20 = vld [vmem:[%s0 + $0x8] sm:$0xf]
  %v21 = vld [vmem:[%s0 + $0xc] sm:$0xf]
  %v22 = vld [vmem:[%s0 + $0x10] sm:$0xf]
  %v23 = vld [vmem:[%s0 + $0x14] sm:$0xf]
  %v24 = vld [vmem:[%s0 + $0x18] sm:$0xf]
  %v25 = vld [vmem:[%s0 + $0x1c] sm:$0xf]
  %v26 = vld [vmem:[%s0 + $0x20] sm:$0xf]
  %v27 = vld [vmem:[%s0 + $0x24] sm:$0xf]
  %v28 = vld [vmem:[%s0 + $0x28] sm:$0xf]
  %v29 = vld [vmem:[%s0 + $0x2c] sm:$0xf]
  %v30 = vld [vmem:[%s0 + $0x30] sm:$0xf]
  %v31 = vld [vmem:[%s0 + $0x34] sm:$0xf]
  %v32 = vld [vmem:[%s0 + $0x38] sm:$0xf]
  %v33 = vld [vmem:[%s0 + $0x3c] sm:$0xf]
  %v34 = vld [vmem:[%s1] sm:$0xf]
  %v35 = vld [vmem:[%s1 + $0x4] sm:$0xf]
  %v36 = vld [vmem:[%s1 + $0x8] sm:$0xf]
  %v37 = vld [vmem:[%s1 + $0xc] sm:$0xf]
  %v54 = vunpack.c.l.b16 %v18
  %v55 = vunpack.c.l.b16 %v19
  %v56 = vunpack.c.l.b16 %v20
  %v57 = vunpack.c.l.b16 %v21
  %v58 = vunpack.c.l.b16 %v22
  %v59 = vunpack.c.l.b16 %v23
  %v60 = vunpack.c.l.b16 %v24
  %v61 = vunpack.c.l.b16 %v25
  %v62 = vunpack.c.l.b16 %v26
  %v63 = vunpack.c.l.b16 %v27
  %v64 = vunpack.c.l.b16 %v28
  %v65 = vunpack.c.l.b16 %v29
  %v66 = vunpack.c.l.b16 %v30
  %v67 = vunpack.c.l.b16 %v31
  %v68 = vunpack.c.l.b16 %v32
  %v69 = vunpack.c.l.b16 %v33
  %v70 = vpack.c.b16 %v55, %v54
  %v71 = vpack.c.b16 %v57, %v56
  %v72 = vpack.c.b16 %v59, %v58
  %v73 = vpack.c.b16 %v61, %v60
  %v74 = vpack.c.b16 %v63, %v62
  %v75 = vpack.c.b16 %v65, %v64
  %v76 = vpack.c.b16 %v67, %v66
  %v77 = vpack.c.b16 %v69, %v68
  %v82 = vunpack.c.l.b16 %v34
  %v83 = vunpack.c.l.b16 %v35
  %v84 = vunpack.c.l.b16 %v36
  %v85 = vunpack.c.l.b16 %v37
  %v86 = vpack.c.b16 %v83, %v82
  %v87 = vpack.c.b16 %v85, %v84
  %vm90 = vcmask 261120
  %v92 = vsel %vm90, %v70, 0
  %v95 = vsel %vm90, %v71, 0
  %v98 = vsel %vm90, %v72, 0
  %v101 = vsel %vm90, %v73, 0
  %v104 = vsel %vm90, %v74, 0
  %v107 = vsel %vm90, %v75, 0
  %v110 = vsel %vm90, %v76, 0
  %v113 = vsel %vm90, %v77, 0
  %115 = vmatprep.subr.bf16.mxu0 0
  %116 = vmatpush1.bf16.msra.mxu0 0
  %117 = vmatprep.subr.bf16.mxu0 0
  %118 = vmatpush1.bf16.msra.mxu0 0
  %119 = vmatprep.subr.bf16.mxu0 0
  %120 = vmatpush1.bf16.msra.mxu0 0
  %121 = vmatprep.subr.bf16.mxu0 0
  %122 = vmatpush1.bf16.msra.mxu0 0
  %123 = vmatprep.subr.bf16.mxu0 0
  %124 = vmatpush1.bf16.msra.mxu0 0
  %125 = vmatprep.subr.bf16.mxu0 0
  %126 = vmatpush1.bf16.msra.mxu0 0
  %127 = vmatprep.subr.bf16.mxu0 0
  %128 = vmatpush1.bf16.msra.mxu0 %v87
  %129 = vmatprep.subr.bf16.mxu0 0
  %130 = vmatpush1.bf16.msra.mxu0 %v86
  %131 = vmatprep.subr.bf16.mxu0 0
  %132 = vmatpush2.bf16.msra.mxu0 0
  %133 = vmatprep.subr.bf16.mxu0 0
  %134 = vmatpush2.bf16.msra.mxu0 0
  %135 = vmatprep.subr.bf16.mxu0 0
  %136 = vmatpush2.bf16.msra.mxu0 0
  %137 = vmatprep.subr.bf16.mxu0 0
  %138 = vmatpush2.bf16.msra.mxu0 0
  %139 = vmatprep.subr.bf16.mxu0 0
  %140 = vmatpush2.bf16.msra.mxu0 0
  %141 = vmatprep.subr.bf16.mxu0 0
  %142 = vmatpush2.bf16.msra.mxu0 0
  %143 = vmatprep.subr.bf16.mxu0 0
  %144 = vmatpush2.bf16.msra.mxu0 0
  %145 = vmatprep.subr.bf16.mxu0 0
  %146 = vmatpush2.bf16.msra.mxu0 0
  %147 = vmatprep.mubr.bf16.mxu0 0
  %148 = vmatmul.mubr.bf16.gmra.mxu0 %v92
  %v149 = vpop.f32.mrf.mxu0
  %v150 = vadd.f32 0.0, %v149
  %v151 = vpop.f32.mrf.mxu0
  %v152 = vpop.f32.mrf.mxu0
  %v153 = vadd.f32 0.0, %v152
  %v154 = vpop.f32.mrf.mxu0
  %155 = vmatprep.mubr.bf16.mxu0 0
  %156 = vmatmul.mubr.bf16.gmra.mxu0 %v95
  %v157 = vpop.f32.mrf.mxu0
  %v158 = vadd.f32 0.0, %v157
  %v159 = vpop.f32.mrf.mxu0
  %v160 = vpop.f32.mrf.mxu0
  %v161 = vadd.f32 0.0, %v160
  %v162 = vpop.f32.mrf.mxu0
  %163 = vmatprep.mubr.bf16.mxu0 0
  %164 = vmatmul.mubr.bf16.gmra.mxu0 %v98
  %v165 = vpop.f32.mrf.mxu0
  %v166 = vadd.f32 0.0, %v165
  %v167 = vpop.f32.mrf.mxu0
  %v168 = vpop.f32.mrf.mxu0
  %v169 = vadd.f32 0.0, %v168
  %v170 = vpop.f32.mrf.mxu0
  %171 = vmatprep.mubr.bf16.mxu0 0
  %172 = vmatmul.mubr.bf16.gmra.mxu0 %v101
  %v173 = vpop.f32.mrf.mxu0
  %v174 = vadd.f32 0.0, %v173
  %v175 = vpop.f32.mrf.mxu0
  %v176 = vpop.f32.mrf.mxu0
  %v177 = vadd.f32 0.0, %v176
  %v178 = vpop.f32.mrf.mxu0
  %179 = vmatprep.mubr.bf16.mxu0 0
  %180 = vmatmul.mubr.bf16.gmra.mxu0 %v104
  %v181 = vpop.f32.mrf.mxu0
  %v182 = vadd.f32 0.0, %v181
  %v183 = vpop.f32.mrf.mxu0
  %v184 = vpop.f32.mrf.mxu0
  %v185 = vadd.f32 0.0, %v184
  %v186 = vpop.f32.mrf.mxu0
  %187 = vmatprep.mubr.bf16.mxu0 0
  %188 = vmatmul.mubr.bf16.gmra.mxu0 %v107
  %v189 = vpop.f32.mrf.mxu0
  %v190 = vadd.f32 0.0, %v189
  %v191 = vpop.f32.mrf.mxu0
  %v192 = vpop.f32.mrf.mxu0
  %v193 = vadd.f32 0.0, %v192
  %v194 = vpop.f32.mrf.mxu0
  %195 = vmatprep.mubr.bf16.mxu0 0
  %196 = vmatmul.mubr.bf16.gmra.mxu0 %v110
  %v197 = vpop.f32.mrf.mxu0
  %v198 = vadd.f32 0.0, %v197
  %v199 = vpop.f32.mrf.mxu0
  %v200 = vpop.f32.mrf.mxu0
  %v201 = vadd.f32 0.0, %v200
  %v202 = vpop.f32.mrf.mxu0
  %203 = vmatprep.mubr.bf16.mxu0 0
  %204 = vmatmul.mubr.bf16.gmra.mxu0 %v113
  %v205 = vpop.f32.mrf.mxu0
  %v206 = vadd.f32 0.0, %v205
  %v207 = vpop.f32.mrf.mxu0
  %v208 = vpop.f32.mrf.mxu0
  %v209 = vadd.f32 0.0, %v208
  %v210 = vpop.f32.mrf.mxu0
  %211 = vdwg.mxu0
  %v212 = vld [vmem:[%s2] sm:$0x1]
  %v214 = vlaneseq
  %v215 = vshrl.u32 %v214, 7
  %v216 = vsub.s32 0, %v215
  %v217 = vrot.slane %v212, %v216
  %v219 = vmul.f32 %v150, %v217
  %v220 = vmul.f32 %v153, %v217
  %v221 = vmul.f32 %v158, %v217
  %v222 = vmul.f32 %v161, %v217
  %v223 = vmul.f32 %v166, %v217
  %v224 = vmul.f32 %v169, %v217
  %v225 = vmul.f32 %v174, %v217
  %v226 = vmul.f32 %v177, %v217
  %v227 = vmul.f32 %v182, %v217
  %v228 = vmul.f32 %v185, %v217
  %v229 = vmul.f32 %v190, %v217
  %v230 = vmul.f32 %v193, %v217
  %v231 = vmul.f32 %v198, %v217
  %v232 = vmul.f32 %v201, %v217
  %v233 = vmul.f32 %v206, %v217
  %v234 = vmul.f32 %v209, %v217
  %v235 = vld [vmem:[%s3] sm:$0x1]
  %v237 = vlaneseq
  %v238 = vshrl.u32 %v237, 7
  %v239 = vsub.s32 0, %v238
  %v240 = vrot.slane %v235, %v239
  %v242 = vadd.f32 %v219, %v240
  %v243 = vadd.f32 %v220, %v240
  %v244 = vadd.f32 %v221, %v240
  %v245 = vadd.f32 %v222, %v240
  %v246 = vadd.f32 %v223, %v240
  %v247 = vadd.f32 %v224, %v240
  %v248 = vadd.f32 %v225, %v240
  %v249 = vadd.f32 %v226, %v240
  %v250 = vadd.f32 %v227, %v240
  %v251 = vadd.f32 %v228, %v240
  %v252 = vadd.f32 %v229, %v240
  %v253 = vadd.f32 %v230, %v240
  %v254 = vadd.f32 %v231, %v240
  %v255 = vadd.f32 %v232, %v240
  %v256 = vadd.f32 %v233, %v240
  %v257 = vadd.f32 %v234, %v240
  %v258 = vmax.f32 %v242, 0.0
  %v259 = vmax.f32 %v243, 0.0
  %v260 = vmax.f32 %v244, 0.0
  %v261 = vmax.f32 %v245, 0.0
  %v262 = vmax.f32 %v246, 0.0
  %v263 = vmax.f32 %v247, 0.0
  %v264 = vmax.f32 %v248, 0.0
  %v265 = vmax.f32 %v249, 0.0
  %v266 = vmax.f32 %v250, 0.0
  %v267 = vmax.f32 %v251, 0.0
  %v268 = vmax.f32 %v252, 0.0
  %v269 = vmax.f32 %v253, 0.0
  %v270 = vmax.f32 %v254, 0.0
  %v271 = vmax.f32 %v255, 0.0
  %v272 = vmax.f32 %v256, 0.0
  %v273 = vmax.f32 %v257, 0.0
  %v274 = vpack.c.bf16 %v259, %v258
  %v275 = vpack.c.bf16 %v261, %v260
  %v276 = vpack.c.bf16 %v263, %v262
  %v277 = vpack.c.bf16 %v265, %v264
  %v278 = vpack.c.bf16 %v267, %v266
  %v279 = vpack.c.bf16 %v269, %v268
  %v280 = vpack.c.bf16 %v271, %v270
  %v281 = vpack.c.bf16 %v273, %v272
  %v290 = vunpack.c.l.b16 %v274
  %v291 = vunpack.c.h.b16 %v274
  %v292 = vunpack.c.l.b16 %v275
  %v293 = vunpack.c.h.b16 %v275
  %v294 = vunpack.c.l.b16 %v276
  %v295 = vunpack.c.h.b16 %v276
  %v296 = vunpack.c.l.b16 %v277
  %v297 = vunpack.c.h.b16 %v277
  %v298 = vunpack.c.l.b16 %v278
  %v299 = vunpack.c.h.b16 %v278
  %v300 = vunpack.c.l.b16 %v279
  %v301 = vunpack.c.h.b16 %v279
  %v302 = vunpack.c.l.b16 %v280
  %v303 = vunpack.c.h.b16 %v280
  %v304 = vunpack.c.l.b16 %v281
  %v305 = vunpack.c.h.b16 %v281
  %v306 = vpack.c.b16 %v290, %v290
  %v307 = vpack.c.b16 %v291, %v291
  %v308 = vpack.c.b16 %v292, %v292
  %v309 = vpack.c.b16 %v293, %v293
  %v310 = vpack.c.b16 %v294, %v294
  %v311 = vpack.c.b16 %v295, %v295
  %v312 = vpack.c.b16 %v296, %v296
  %v313 = vpack.c.b16 %v297, %v297
  %v314 = vpack.c.b16 %v298, %v298
  %v315 = vpack.c.b16 %v299, %v299
  %v316 = vpack.c.b16 %v300, %v300
  %v317 = vpack.c.b16 %v301, %v301
  %v318 = vpack.c.b16 %v302, %v302
  %v319 = vpack.c.b16 %v303, %v303
  %v320 = vpack.c.b16 %v304, %v304
  %v321 = vpack.c.b16 %v305, %v305
  %338 = vst [vmem:[%s4] sm:$0xf] %v306
  %339 = vst [vmem:[%s4 + $0x4] sm:$0xf] %v307
  %340 = vst [vmem:[%s4 + $0x8] sm:$0xf] %v308
  %341 = vst [vmem:[%s4 + $0xc] sm:$0xf] %v309
  %342 = vst [vmem:[%s4 + $0x10] sm:$0xf] %v310
  %343 = vst [vmem:[%s4 + $0x14] sm:$0xf] %v311
  %344 = vst [vmem:[%s4 + $0x18] sm:$0xf] %v312
  %345 = vst [vmem:[%s4 + $0x1c] sm:$0xf] %v313
  %346 = vst [vmem:[%s4 + $0x20] sm:$0xf] %v314
  %347 = vst [vmem:[%s4 + $0x24] sm:$0xf] %v315
  %348 = vst [vmem:[%s4 + $0x28] sm:$0xf] %v316
  %349 = vst [vmem:[%s4 + $0x2c] sm:$0xf] %v317
  %350 = vst [vmem:[%s4 + $0x30] sm:$0xf] %v318
  %351 = vst [vmem:[%s4 + $0x34] sm:$0xf] %v319
  %352 = vst [vmem:[%s4 + $0x38] sm:$0xf] %v320
  %353 = vst [vmem:[%s4 + $0x3c] sm:$0xf] %v321
  // Predicated region
  $region18: #{tpu_custom_call.1} parent=0 // pred_check
    _
  $region19: #{tpu_custom_call.1} parent=0 // pred_check_branch
    %355 = sbr.rel (0) target = $region21
  $region20: #{tpu_custom_call.1} parent=0 // pred_region
    _
  $region21: #{tpu_custom_call.1} parent=0 // pred_fallthru
    _
  // Predicated region
  $region22: #{tpu_custom_call.1} parent=0 // pred_check
    _
  $region23: #{tpu_custom_call.1} parent=0 // pred_check_branch
    %357 = sbr.rel (0) target = $region25
  $region24: #{tpu_custom_call.1} parent=0 // pred_region
    _
  $region25: #{tpu_custom_call.1} parent=0 // pred_fallthru
    _

</llo_original>
